<compile_context>
chip_gen: v7x
topology: tpu7x:2x2x1
jax: 0.10.0
libtpu: 0.0.40
codegen_flags: <defaults>
</compile_context>

<pallas_src>
import jax
import jax.numpy as jnp
from jax import lax
from jax.experimental import pallas as pl
from jax.experimental.pallas import tpu as pltpu


_BIG = 1.0e30       # additive-mask magnitude for the vectorized scatter-amax
_MSG_BLK = 16       # messages per fori_loop step (bf16 sublane-tile aligned)


def _round_up(x, m):
    return ((x + m - 1) // m) * m


def _mish(x):
    # x * tanh(softplus(x)). tanh saturates to 1.0 well below the softplus
    # threshold of 20, so clamping the exp argument reproduces torch.mish exactly.
    return x * jnp.tanh(jnp.log(1.0 + jnp.exp(jnp.minimum(x, 20.0))))


def _pinned_spec(shape):
    nd = len(shape)
    return pl.BlockSpec(shape, lambda i, _nd=nd: (0,) * _nd)


# ---------------------------------------------------------------------------
# Kernel 1: relation MLP  out = W2 @ (x + mish(W1 @ x + b1)) + b2, row tiled
# ---------------------------------------------------------------------------
def _mlp_kernel(x_ref, w1_ref, b1_ref, w2_ref, b2_ref, o_ref):
    x = x_ref[...]                                                     # [TM, Din]
    h = jnp.dot(x, w1_ref[...], preferred_element_type=jnp.float32) + b1_ref[...]
    y = x + _mish(h)
    o_ref[...] = (jnp.dot(y, w2_ref[...], preferred_element_type=jnp.float32)
                  + b2_ref[...])                                       # [TM, Dout]


def mlp_forward(x, w1, b1, w2, b2, block_rows=256):
    m, d_in = x.shape
    d_out = w2.shape[1]
    tm = min(block_rows, max(8, _round_up(m, 8)))
    grid = (pl.cdiv(m, tm),)
    return pl.pallas_call(
        _mlp_kernel,
        out_shape=jax.ShapeDtypeStruct((m, d_out), jnp.float32),
        grid=grid,
        in_specs=[pl.BlockSpec((tm, d_in), lambda i: (i, 0)),
                  _pinned_spec(w1.shape), _pinned_spec(b1.shape),
                  _pinned_spec(w2.shape), _pinned_spec(b2.shape)],
        out_specs=pl.BlockSpec((tm, d_out), lambda i: (i, 0)),
        compiler_params=pltpu.CompilerParams(
            dimension_semantics=("parallel",)),
    )(x, w1, b1, w2, b2)


# ---------------------------------------------------------------------------
# Kernel 2: fused message aggregation (scatter-amax + exp scatter-add + log
#           combine) + update MLP on cat = [max_msg, object_embeddings]
# ---------------------------------------------------------------------------
def _aggregate_update_kernel(
        msgs_ref, oh_ref, oht_ref, ff_ref, obj_ref,
        w1aa_ref, w1ab_ref, w1ba_ref, w1bb_ref, b1a_ref, b1b_ref,
        w2a_ref, w2b_ref, b2_ref, out_ref):
    f32 = jnp.float32
    msgs = msgs_ref[...]                         # [T, E]  f32 (zero-padded rows)
    ohf = oh_ref[...].astype(f32)                # [T, N]  one-hot (pad rows = 0)
    ohtf = oht_ref[...].astype(f32)              # [N, T]
    obj = obj_ref[...]                           # [N, E]
    t_pad, e = msgs.shape
    n = obj.shape[0]
    n_blk = t_pad // _MSG_BLK

    # ----- vectorized scatter-amax over blocks of _MSG_BLK messages ---------
    def blk_max(b, m_all):
        s = pl.multiple_of(b * _MSG_BLK, _MSG_BLK)
        msg_blk = msgs_ref[pl.ds(s, _MSG_BLK), :]                           # [B, E]
        mask_blk = (oh_ref[pl.ds(s, _MSG_BLK), :].astype(f32) - 1.0) * _BIG  # [B, N]
        cand = msg_blk[:, None, :] + mask_blk[:, :, None]                   # [B, N, E]
        return jnp.maximum(m_all, jnp.max(cand, axis=0))                    # [N, E]

    m_all = lax.fori_loop(0, n_blk, blk_max,
                          jnp.full((n, e), -_BIG, dtype=f32),
                          unroll=min(n_blk, 8))

    # torch scatter_reduce_('amax'): include_self=False for the FIRST relation's
    # scatter, include_self=True (vs. the zeros init) for all subsequent ones.
    written_any = jnp.sum(ohtf, axis=1, keepdims=True) > 0.5                # [N, 1]
    written_first = jnp.sum(ohtf * ff_ref[...], axis=1, keepdims=True) > 0.5
    exps_max = jnp.where(
        written_any,
        jnp.where(written_first, m_all, jnp.maximum(m_all, 0.0)),
        f32(0.0))                                                           # [N, E]

    # gather the per-message offsets & scatter-add the exps (one-hot MXU matmuls)
    max_off = jnp.dot(ohf, exps_max, preferred_element_type=f32)            # [T, E]
    exps = jnp.exp(12.0 * (msgs - max_off))                                 # [T, E]
    exps_sum = jnp.dot(ohtf, exps, preferred_element_type=f32) + f32(1e-16)  # [N, E]
    # rows with no incoming messages end up at log(1e-16)/12 + 0, matching torch.
    max_msg = (1.0 / 12.0) * jnp.log(exps_sum) + exps_max                   # [N, E]

    # ----- fused update MLP on cat = [max_msg, obj]; weights pre-split E x E --
    ha = (jnp.dot(max_msg, w1aa_ref[...], preferred_element_type=f32)
          + jnp.dot(obj, w1ba_ref[...], preferred_element_type=f32) + b1a_ref[...])
    hb = (jnp.dot(max_msg, w1ab_ref[...], preferred_element_type=f32)
          + jnp.dot(obj, w1bb_ref[...], preferred_element_type=f32) + b1b_ref[...])
    ya = max_msg + _mish(ha)
    yb = obj + _mish(hb)
    out_ref[...] = (jnp.dot(ya, w2a_ref[...], preferred_element_type=f32)
                    + jnp.dot(yb, w2b_ref[...], preferred_element_type=f32)
                    + b2_ref[...])                                          # [N, E]


def aggregate_and_update(msgs, idx, first_count, object_embeddings, update_split):
    n, e = object_embeddings.shape
    t = msgs.shape[0]
    t_pad = _round_up(max(t, 1), _MSG_BLK)
    pad = t_pad - t
    msgs_p = jnp.pad(msgs.astype(jnp.float32), ((0, pad), (0, 0)))
    idx_p = jnp.pad(idx.astype(jnp.int32), (0, pad), constant_values=-1)
    obj_ids = jnp.arange(n, dtype=jnp.int32)
    # bf16 one-hots (exact for 0/1), built directly in both orientations so the
    # kernel only needs natively-supported NN matmuls; no XLA transpose.
    oh = (idx_p[:, None] == obj_ids[None, :]).astype(jnp.bfloat16)    # [T_pad, N]
    oht = (obj_ids[:, None] == idx_p[None, :]).astype(jnp.bfloat16)   # [N, T_pad]
    ff = (jnp.arange(t_pad) < first_count).astype(jnp.float32)[None, :]

    args = (msgs_p, oh, oht, ff, object_embeddings) + tuple(update_split)
    return pl.pallas_call(
        _aggregate_update_kernel,
        out_shape=jax.ShapeDtypeStruct((n, e), jnp.float32),
        grid=(1,),
        in_specs=[_pinned_spec(a.shape) for a in args],
        out_specs=_pinned_spec((n, e)),
        compiler_params=pltpu.CompilerParams(
            dimension_semantics=("arbitrary",)),
    )(*args)


# ---------------------------------------------------------------------------
# Module wrapper
# ---------------------------------------------------------------------------
class RelationMessagePassingPallas:
    def __init__(self, relations, embedding_size, key):
        self.embedding_size = embedding_size
        self.relations = list(relations)
        self.relation_params = []
        keys = jax.random.split(key, len(relations) + 1)
        for (rel, arity), k in zip(relations, keys[:-1]):
            assert rel == len(self.relation_params)
            size = arity * embedding_size
            self.relation_params.append(self._init_mlp(k, size, size) if size > 0
                                        else None)
        w1, b1, w2, b2 = self._init_mlp(keys[-1], 2 * embedding_size,
                                        embedding_size)
        e = embedding_size
        # Pre-split the update-MLP weights into E x E blocks so the fused kernel
        # needs no in-kernel lane concatenation of [max_msg, object_embeddings].
        self.update_split = (
            w1[:e, :e], w1[:e, e:], w1[e:, :e], w1[e:, e:],   # w1aa w1ab w1ba w1bb
            b1[:, :e], b1[:, e:],                             # b1a  b1b
            w2[:e, :], w2[e:, :],                             # w2a  w2b
            b2,
        )

    @staticmethod
    def _init_mlp(key, d_in, d_out):
        # deterministic init mimicking nn.Linear default (uniform +-1/sqrt(fan_in)).
        # Weights stored as [in, out] so kernels compute x @ W + b.
        k1, k2, k3, k4 = jax.random.split(key, 4)
        bound = 1.0 / (d_in ** 0.5)
        w1 = jax.random.uniform(k1, (d_in, d_in), jnp.float32, -bound, bound)
        b1 = jax.random.uniform(k2, (1, d_in), jnp.float32, -bound, bound)
        w2 = jax.random.uniform(k3, (d_in, d_out), jnp.float32, -bound, bound)
        b2 = jax.random.uniform(k4, (1, d_out), jnp.float32, -bound, bound)
        return (w1, b1, w2, b2)

    def __call__(self, object_embeddings, relations_dict):
        n, e = object_embeddings.shape
        msgs, idxs = [], []
        first_count = None
        # iteration in relation-id order == torch's enumerate(self._relation_mlps),
        # so the "first scatter" (include_self=False) matches the reference.
        for rel, params in enumerate(self.relation_params):
            if params is None or rel not in relations_dict:
                continue
            values = relations_dict[rel]                       # flat int32 [M*arity]
            arity = self.relations[rel][1]
            gathered = jnp.take(object_embeddings, values, axis=0)   # glue gather
            x = gathered.reshape(-1, arity * e)                      # [M, arity*E]
            y = mlp_forward(x, *params)                              # Pallas MLP
            msgs.append(y.reshape(-1, e))                            # [M*arity, E]
            idxs.append(values.reshape(-1))
            if first_count is None:
                first_count = int(values.size)
        if msgs:
            all_msgs = jnp.concatenate(msgs, axis=0)
            all_idx = jnp.concatenate(idxs, axis=0)
        else:
            all_msgs = jnp.zeros((0, e), jnp.float32)
            all_idx = jnp.zeros((0,), jnp.int32)
            first_count = 0

        return aggregate_and_update(all_msgs, all_idx, first_count,
                                    object_embeddings, self.update_split)


if __name__ == "__main__":
    key = jax.random.PRNGKey(0)
    k_params, k_emb, k_r0, k_r1 = jax.random.split(key, 4)

    embedding_size = 32
    num_objects = 16
    # (relation_id, arity); arity-0 relation gets no MLP (None), matching the module
    relations = [(0, 1), (1, 2), (2, 0)]

    model = RelationMessagePassingPallas(relations, embedding_size, k_params)

    object_embeddings = jax.random.normal(
        k_emb, (num_objects, embedding_size), jnp.float32)
    # relation 0 (arity 1): 6 ground atoms -> 6 indices
    # relation 1 (arity 2): 5 ground atoms -> 10 indices
    rel0_values = jax.random.randint(k_r0, (6,), 0, num_objects, jnp.int32)
    rel1_values = jax.random.randint(k_r1, (10,), 0, num_objects, jnp.int32)
    relations_dict = {0: rel0_values, 1: rel1_values}

    out = model(object_embeddings, relations_dict)
    out = jax.block_until_ready(out)
    assert out.shape == (num_objects, embedding_size)
    assert bool(jnp.all(jnp.isfinite(out)))
    print("KERNEL_OK")
</pallas_src>

<mosaic_0001>
module attributes {stable_mosaic.version = 11 : i64} {
  func.func @_mlp_kernel(%arg0: i32, %arg1: memref<8x32xf32, #tpu.memory_space<vmem>>, %arg2: memref<32x32xf32, #tpu.memory_space<vmem>>, %arg3: memref<1x32xf32, #tpu.memory_space<vmem>>, %arg4: memref<32x32xf32, #tpu.memory_space<vmem>>, %arg5: memref<1x32xf32, #tpu.memory_space<vmem>>, %arg6: memref<8x32xf32, #tpu.memory_space<vmem>>) attributes {dimension_semantics = [#tpu.dimension_semantics<parallel>], iteration_bounds = array<i64: 1>, scalar_prefetch = 0 : i64, scratch_operands = 0 : i64, tpu.core_type = #tpu.core_type<tc>, window_params = [{transform_indices = @transform_0, window_bounds = array<i64: 8, 32>}, {pipeline_mode = #tpu.pipeline_mode<synchronous>, transform_indices = @transform_1, window_bounds = array<i64: 32, 32>}, {pipeline_mode = #tpu.pipeline_mode<synchronous>, transform_indices = @transform_2, window_bounds = array<i64: 1, 32>}, {pipeline_mode = #tpu.pipeline_mode<synchronous>, transform_indices = @transform_3, window_bounds = array<i64: 32, 32>}, {pipeline_mode = #tpu.pipeline_mode<synchronous>, transform_indices = @transform_4, window_bounds = array<i64: 1, 32>}, {transform_indices = @transform_5, window_bounds = array<i64: 8, 32>}]} {
    %c0 = arith.constant 0 : index
    %c0_0 = arith.constant 0 : index
    %0 = vector.load %arg1[%c0, %c0_0] : memref<8x32xf32, #tpu.memory_space<vmem>>, vector<8x32xf32>
    %c0_1 = arith.constant 0 : index
    %c0_2 = arith.constant 0 : index
    %1 = vector.load %arg2[%c0_1, %c0_2] : memref<32x32xf32, #tpu.memory_space<vmem>>, vector<32x32xf32>
    %cst = arith.constant dense<0.000000e+00> : vector<8x32xf32>
    %2 = tpu.matmul %0, %1, %cst {dimension_numbers = #tpu.dot_dimension_numbers<[1], [0], [0], [1], [0, 0, 1, 1], [], []>} : vector<8x32xf32>, vector<32x32xf32>, vector<8x32xf32> -> vector<8x32xf32>
    %c0_3 = arith.constant 0 : index
    %c0_4 = arith.constant 0 : index
    %3 = vector.load %arg3[%c0_3, %c0_4] : memref<1x32xf32, #tpu.memory_space<vmem>>, vector<1x32xf32>
    %4 = vector.broadcast %3 : vector<1x32xf32> to vector<8x32xf32>
    %5 = arith.addf %2, %4 : vector<8x32xf32>
    %cst_5 = arith.constant 2.000000e+01 : f32
    %6 = vector.broadcast %cst_5 : f32 to vector<8x32xf32>
    %7 = arith.minimumf %5, %6 : vector<8x32xf32>
    %8 = math.exp %7 : vector<8x32xf32>
    %cst_6 = arith.constant 1.000000e+00 : f32
    %9 = vector.broadcast %cst_6 : f32 to vector<8x32xf32>
    %10 = arith.addf %9, %8 : vector<8x32xf32>
    %11 = math.log %10 : vector<8x32xf32>
    %12 = math.tanh %11 : vector<8x32xf32>
    %13 = arith.mulf %5, %12 : vector<8x32xf32>
    %14 = arith.addf %0, %13 : vector<8x32xf32>
    %c0_7 = arith.constant 0 : index
    %c0_8 = arith.constant 0 : index
    %15 = vector.load %arg4[%c0_7, %c0_8] : memref<32x32xf32, #tpu.memory_space<vmem>>, vector<32x32xf32>
    %cst_9 = arith.constant dense<0.000000e+00> : vector<8x32xf32>
    %16 = tpu.matmul %14, %15, %cst_9 {dimension_numbers = #tpu.dot_dimension_numbers<[1], [0], [0], [1], [0, 0, 1, 1], [], []>} : vector<8x32xf32>, vector<32x32xf32>, vector<8x32xf32> -> vector<8x32xf32>
    %c0_10 = arith.constant 0 : index
    %c0_11 = arith.constant 0 : index
    %17 = vector.load %arg5[%c0_10, %c0_11] : memref<1x32xf32, #tpu.memory_space<vmem>>, vector<1x32xf32>
    %18 = vector.broadcast %17 : vector<1x32xf32> to vector<8x32xf32>
    %19 = arith.addf %16, %18 : vector<8x32xf32>
    %c0_12 = arith.constant 0 : index
    %c0_13 = arith.constant 0 : index
    %20 = vector.load %arg6[%c0_12, %c0_13] : memref<8x32xf32, #tpu.memory_space<vmem>>, vector<8x32xf32>
    tpu.vector_store %arg6[%c0_12, %c0_13], %19 {strides = array<i32>} : memref<8x32xf32, #tpu.memory_space<vmem>>, vector<8x32xf32>,
    return
  }
  func.func @transform_0(%arg0: i32) -> (i32, i32) {
    %c0_i32 = arith.constant 0 : i32
    %c0_i32_0 = arith.constant 0 : i32
    return %arg0, %c0_i32 : i32, i32
  }
  func.func @transform_1(%arg0: i32) -> (i32, i32) {
    %c0_i32 = arith.constant 0 : i32
    %c0_i32_0 = arith.constant 0 : i32
    %c0_i32_1 = arith.constant 0 : i32
    return %c0_i32, %c0_i32_0 : i32, i32
  }
  func.func @transform_2(%arg0: i32) -> (i32, i32) {
    %c0_i32 = arith.constant 0 : i32
    %c0_i32_0 = arith.constant 0 : i32
    %c0_i32_1 = arith.constant 0 : i32
    return %c0_i32, %c0_i32_0 : i32, i32
  }
  func.func @transform_3(%arg0: i32) -> (i32, i32) {
    %c0_i32 = arith.constant 0 : i32
    %c0_i32_0 = arith.constant 0 : i32
    %c0_i32_1 = arith.constant 0 : i32
    return %c0_i32, %c0_i32_0 : i32, i32
  }
  func.func @transform_4(%arg0: i32) -> (i32, i32) {
    %c0_i32 = arith.constant 0 : i32
    %c0_i32_0 = arith.constant 0 : i32
    %c0_i32_1 = arith.constant 0 : i32
    return %c0_i32, %c0_i32_0 : i32, i32
  }
  func.func @transform_5(%arg0: i32) -> (i32, i32) {
    %c0_i32 = arith.constant 0 : i32
    %c0_i32_0 = arith.constant 0 : i32
    return %arg0, %c0_i32 : i32, i32
  }
}

</mosaic_0001>

<llo_original>
// kernel: tpu_custom_call.1
$region0: #{tpu_custom_call.1}
  #allocation0 [shape = 'u32[]', space=smem, size = 0x4, offset = 0x4, fixed_abs, tag = 'smem constant byte address 0x4 - core index']
  #allocation1 [shape = 'u32[144,128]{1,0:T(1,128)}', space=vmem, size = 0x12000, scoped, tag = 'internal scratch']
  %s0 = inlined_call_operand.hbm [shape: f32[6,32], index: 0, kind: input, shape index: {}]
  %s1 = inlined_call_operand.hbm [shape: f32[32,32], index: 1, kind: input, shape index: {}]
  %s2 = inlined_call_operand.vmem [shape: f32[1,32], index: 2, kind: input, shape index: {}]
  %s3 = inlined_call_operand.hbm [shape: f32[32,32], index: 3, kind: input, shape index: {}]
  %s4 = inlined_call_operand.vmem [shape: f32[1,32], index: 4, kind: input, shape index: {}]
  %s5 = inlined_call_operand.hbm [shape: f32[6,32], index: 5, kind: output, shape index: {}]
  %s6 = sld [smem:[#allocation0]]
  $region42: #{tpu_custom_call.1} parent=0
    _
  %s8 = ssub.s32 1, %s6
  %s9 = scalar_select 0, %s8, %s6
  $region1: #{tpu_custom_call.1} parent=0
    #allocation2 [shape = 'u8[4096]{0}', space=vmem, size = 0x1000, scoped, tag = 'input window, operand 0, single buffered']
    #allocation3 [shape = 's32[1]{0}', space=sflag, size = 0x4, scoped, tag = 'scoped memory for tpu_custom_call.1']
    #allocation4 [shape = 's32[1]{0}', space=sflag, size = 0x4, scoped, tag = 'scoped memory for tpu_custom_call.1']
    #allocation5 [shape = 'u8[16384]{0}', space=vmem, size = 0x4000, scoped, tag = 'input window, operand 1, single buffered']
    #allocation6 [shape = 's32[1]{0}', space=sflag, size = 0x4, scoped, tag = 'scoped memory for tpu_custom_call.1']
    #allocation7 [shape = 'u8[16384]{0}', space=vmem, size = 0x4000, scoped, tag = 'input window, operand 3, single buffered']
    #allocation8 [shape = 'u8[4096]{0}', space=vmem, size = 0x1000, scoped, tag = 'output window, operand 0, single buffered']
    %10 = vsyncpa [#allocation3], 0
    %11 = vsyncpa [#allocation6], 0
    %12 = vsyncpa [#allocation4], 0
    // Predicated region
    $region2: #{tpu_custom_call.1} parent=1 // pred_check
      _
    $region3: #{tpu_custom_call.1} parent=1 // pred_check_branch
      %14 = sbr.rel (0) target = $region5
    $region4: #{tpu_custom_call.1} parent=1 // pred_region
      %s16 = ssub.s32 128, 128
      %17 = vsyncadd [#allocation3], %s16
      %s19 = sshll.u32 [#allocation2], 4
      %s20 = int_to_ptr.vmem [resolvable:$true] %s19
      %22 = dma.hbm_to_vmem [thread:$0]  %s0, 128, %s20, [#allocation3]
    $region5: #{tpu_custom_call.1} parent=1 // pred_fallthru
      _
    // Predicated region
    $region6: #{tpu_custom_call.1} parent=1 // pred_check
      _
    $region7: #{tpu_custom_call.1} parent=1 // pred_check_branch
      %24 = sbr.rel (0) target = $region9
    $region8: #{tpu_custom_call.1} parent=1 // pred_region
      %s26 = ssub.s32 512, 512
      %27 = vsyncadd [#allocation6], %s26
      %s28 = sshll.u32 [#allocation5], 4
      %s29 = int_to_ptr.vmem [resolvable:$true] %s28
      %34 = dma.hbm_to_vmem [thread:$0]  %s1, 512, %s29, [#allocation6], 128, 128, 8
    $region9: #{tpu_custom_call.1} parent=1 // pred_fallthru
      _
    // Predicated region
    $region10: #{tpu_custom_call.1} parent=1 // pred_check
      _
    $region11: #{tpu_custom_call.1} parent=1 // pred_check_branch
      %36 = sbr.rel (0) target = $region13
    $region12: #{tpu_custom_call.1} parent=1 // pred_region
      _
    $region13: #{tpu_custom_call.1} parent=1 // pred_fallthru
      _
    // Predicated region
    $region14: #{tpu_custom_call.1} parent=1 // pred_check
      _
    $region15: #{tpu_custom_call.1} parent=1 // pred_check_branch
      %38 = sbr.rel (0) target = $region17
    $region16: #{tpu_custom_call.1} parent=1 // pred_region
      %s40 = ssub.s32 512, 512
      %41 = vsyncadd [#allocation6], %s40
      %s42 = sshll.u32 [#allocation7], 4
      %s43 = int_to_ptr.vmem [resolvable:$true] %s42
      %48 = dma.hbm_to_vmem [thread:$0]  %s3, 512, %s43, [#allocation6], 128, 128, 8
    $region17: #{tpu_custom_call.1} parent=1 // pred_fallthru
      _
    // Predicated region
    $region18: #{tpu_custom_call.1} parent=1 // pred_check
      _
    $region19: #{tpu_custom_call.1} parent=1 // pred_check_branch
      %50 = sbr.rel (0) target = $region21
    $region20: #{tpu_custom_call.1} parent=1 // pred_region
      _
    $region21: #{tpu_custom_call.1} parent=1 // pred_fallthru
      _
    // Predicated region
    $region22: #{tpu_custom_call.1} parent=1 // pred_check
      _
    $region23: #{tpu_custom_call.1} parent=1 // pred_check_branch
      %52 = sbr.rel (0) target = $region25
    $region24: #{tpu_custom_call.1} parent=1 // pred_region
      %53 = dma.done [#allocation3], 128
    $region25: #{tpu_custom_call.1} parent=1 // pred_fallthru
      _
    // Predicated region
    $region26: #{tpu_custom_call.1} parent=1 // pred_check
      _
    $region27: #{tpu_custom_call.1} parent=1 // pred_check_branch
      %55 = sbr.rel (0) target = $region29
    $region28: #{tpu_custom_call.1} parent=1 // pred_region
      %56 = dma.done [#allocation6], 512
    $region29: #{tpu_custom_call.1} parent=1 // pred_fallthru
      _
    // Predicated region
    $region30: #{tpu_custom_call.1} parent=1 // pred_check
      _
    $region31: #{tpu_custom_call.1} parent=1 // pred_check_branch
      %58 = sbr.rel (0) target = $region33
    $region32: #{tpu_custom_call.1} parent=1 // pred_region
      %59 = dma.done [#allocation6], 512
    $region33: #{tpu_custom_call.1} parent=1 // pred_fallthru
      _
    %v60 = vld [vmem:[#allocation2] sm:$0xff]
    %v61 = vld [vmem:[#allocation5] sm:$0xff]
    %v62 = vld [vmem:[#allocation5 + $0x8] sm:$0xff]
    %v63 = vld [vmem:[#allocation5 + $0x10] sm:$0xff]
    %v64 = vld [vmem:[#allocation5 + $0x18] sm:$0xff]
    %v65 = vld [vmem:[%s2] sm:$0x1]
    %v67 = vlaneseq
    %v68 = vshrl.u32 %v67, 7
    %v69 = vsub.s32 0, %v68
    %v70 = vrot.slane %v65, %v69
    %vm72 = vcmask 261120
    %v74 = vsel %vm72, %v60, 0
    %76 = vmatprep.subr.mxu0 0.0
    %77 = vmatpush1.msra.mxu0 %v61
    %78 = vmatprep.subr.mxu0 0.0
    %79 = vmatpush1.msra.mxu0 %v62
    %80 = vmatprep.subr.mxu0 0.0
    %81 = vmatpush1.msra.mxu0 %v63
    %82 = vmatprep.subr.mxu0 0.0
    %83 = vmatpush1.msra.mxu0 %v64
    %84 = vmatprep.subr.mxu0 0.0
    %85 = vmatpush1.msra.mxu0 0.0
    %86 = vmatprep.subr.mxu0 0.0
    %87 = vmatpush1.msra.mxu0 0.0
    %88 = vmatprep.subr.mxu0 0.0
    %89 = vmatpush1.msra.mxu0 0.0
    %90 = vmatprep.subr.mxu0 0.0
    %91 = vmatpush1.msra.mxu0 0.0
    %92 = vmatprep.subr.mxu0 0.0
    %93 = vmatpush1.msra.mxu0 0.0
    %94 = vmatprep.subr.mxu0 0.0
    %95 = vmatpush1.msra.mxu0 0.0
    %96 = vmatprep.subr.mxu0 0.0
    %97 = vmatpush1.msra.mxu0 0.0
    %98 = vmatprep.subr.mxu0 0.0
    %99 = vmatpush1.msra.mxu0 0.0
    %100 = vmatprep.subr.mxu0 0.0
    %101 = vmatpush1.msra.mxu0 0.0
    %102 = vmatprep.subr.mxu0 0.0
    %103 = vmatpush1.msra.mxu0 0.0
    %104 = vmatprep.subr.mxu0 0.0
    %105 = vmatpush1.msra.mxu0 0.0
    %106 = vmatprep.subr.mxu0 0.0
    %107 = vmatpush1.msra.mxu0 0.0
    %108 = vmatprep.subr.mxu0 0.0
    %109 = vmatpush1.msra.mxu0 0.0
    %110 = vmatprep.subr.mxu0 0.0
    %111 = vmatpush1.msra.mxu0 0.0
    %112 = vmatprep.subr.mxu0 0.0
    %113 = vmatpush1.msra.mxu0 0.0
    %114 = vmatprep.subr.mxu0 0.0
    %115 = vmatpush1.msra.mxu0 0.0
    %116 = vmatprep.subr.mxu0 0.0
    %117 = vmatpush1.msra.mxu0 0.0
    %118 = vmatprep.subr.mxu0 0.0
    %119 = vmatpush1.msra.mxu0 0.0
    %120 = vmatprep.subr.mxu0 0.0
    %121 = vmatpush1.msra.mxu0 0.0
    %122 = vmatprep.subr.mxu0 0.0
    %123 = vmatpush1.msra.mxu0 0.0
    %124 = vmatprep.subr.mxu0 0.0
    %125 = vmatpush1.msra.mxu0 0.0
    %126 = vmatprep.subr.mxu0 0.0
    %127 = vmatpush1.msra.mxu0 0.0
    %128 = vmatprep.subr.mxu0 0.0
    %129 = vmatpush1.msra.mxu0 0.0
    %130 = vmatprep.subr.mxu0 0.0
    %131 = vmatpush1.msra.mxu0 0.0
    %132 = vmatprep.subr.mxu0 0.0
    %133 = vmatpush1.msra.mxu0 0.0
    %134 = vmatprep.subr.mxu0 0.0
    %135 = vmatpush1.msra.mxu0 0.0
    %136 = vmatprep.subr.mxu0 0.0
    %137 = vmatpush1.msra.mxu0 0.0
    %138 = vmatprep.subr.mxu0 0.0
    %139 = vmatpush1.msra.mxu0 0.0
    %140 = vmatprep.mubr.f32.mxu0 0.0
    %141 = vmatmul.mubr.f32.gmra.mrb[0].mxu0 %v74
    %v142 = vpop.f32.mrb[0].mxu0
    %v143 = vadd.f32 %v70, %v142
    %v144 = vpop.f32.mrb[0].mxu0
    %145 = vdwg.mxu0
    %v146 = vmin.f32 %v143, 20.0
    %v147 = vmul.f32 %v146, 1.442695
    %v148 = vpow.pop %v147
    %v149 = vadd.f32 %v148, 1.0
    %v150 = vlog2.pop %v149
    %v151 = vmul.f32 %v150, 0.6931472
    %v152 = vtanh.pop %v151
    %v153 = vmul.f32 %v143, %v152
    %v154 = vadd.f32 %v60, %v153
    %v155 = vld [vmem:[#allocation7] sm:$0xff]
    %v156 = vld [vmem:[#allocation7 + $0x8] sm:$0xff]
    %v157 = vld [vmem:[#allocation7 + $0x10] sm:$0xff]
    %v158 = vld [vmem:[#allocation7 + $0x18] sm:$0xff]
    %v159 = vld [vmem:[%s4] sm:$0x1]
    %v161 = vlaneseq
    %v162 = vshrl.u32 %v161, 7
    %v163 = vsub.s32 0, %v162
    %v164 = vrot.slane %v159, %v163
    %v167 = vsel %vm72, %v154, 0
    %169 = vmatprep.subr.mxu0 0.0
    %170 = vmatpush1.msra.mxu0 %v155
    %171 = vmatprep.subr.mxu0 0.0
    %172 = vmatpush1.msra.mxu0 %v156
    %173 = vmatprep.subr.mxu0 0.0
    %174 = vmatpush1.msra.mxu0 %v157
    %175 = vmatprep.subr.mxu0 0.0
    %176 = vmatpush1.msra.mxu0 %v158
    %177 = vmatprep.subr.mxu0 0.0
    %178 = vmatpush1.msra.mxu0 0.0
    %179 = vmatprep.subr.mxu0 0.0
    %180 = vmatpush1.msra.mxu0 0.0
    %181 = vmatprep.subr.mxu0 0.0
    %182 = vmatpush1.msra.mxu0 0.0
    %183 = vmatprep.subr.mxu0 0.0
    %184 = vmatpush1.msra.mxu0 0.0
    %185 = vmatprep.subr.mxu0 0.0
    %186 = vmatpush1.msra.mxu0 0.0
    %187 = vmatprep.subr.mxu0 0.0
    %188 = vmatpush1.msra.mxu0 0.0
    %189 = vmatprep.subr.mxu0 0.0
    %190 = vmatpush1.msra.mxu0 0.0
    %191 = vmatprep.subr.mxu0 0.0
    %192 = vmatpush1.msra.mxu0 0.0
    %193 = vmatprep.subr.mxu0 0.0
    %194 = vmatpush1.msra.mxu0 0.0
    %195 = vmatprep.subr.mxu0 0.0
    %196 = vmatpush1.msra.mxu0 0.0
    %197 = vmatprep.subr.mxu0 0.0
    %198 = vmatpush1.msra.mxu0 0.0
    %199 = vmatprep.subr.mxu0 0.0
    %200 = vmatpush1.msra.mxu0 0.0
    %201 = vmatprep.subr.mxu0 0.0
    %202 = vmatpush1.msra.mxu0 0.0
    %203 = vmatprep.subr.mxu0 0.0
    %204 = vmatpush1.msra.mxu0 0.0
    %205 = vmatprep.subr.mxu0 0.0
    %206 = vmatpush1.msra.mxu0 0.0
    %207 = vmatprep.subr.mxu0 0.0
    %208 = vmatpush1.msra.mxu0 0.0
    %209 = vmatprep.subr.mxu0 0.0
    %210 = vmatpush1.msra.mxu0 0.0
    %211 = vmatprep.subr.mxu0 0.0
    %212 = vmatpush1.msra.mxu0 0.0
    %213 = vmatprep.subr.mxu0 0.0
    %214 = vmatpush1.msra.mxu0 0.0
    %215 = vmatprep.subr.mxu0 0.0
    %216 = vmatpush1.msra.mxu0 0.0
    %217 = vmatprep.subr.mxu0 0.0
    %218 = vmatpush1.msra.mxu0 0.0
    %219 = vmatprep.subr.mxu0 0.0
    %220 = vmatpush1.msra.mxu0 0.0
    %221 = vmatprep.subr.mxu0 0.0
    %222 = vmatpush1.msra.mxu0 0.0
    %223 = vmatprep.subr.mxu0 0.0
    %224 = vmatpush1.msra.mxu0 0.0
    %225 = vmatprep.subr.mxu0 0.0
    %226 = vmatpush1.msra.mxu0 0.0
    %227 = vmatprep.subr.mxu0 0.0
    %228 = vmatpush1.msra.mxu0 0.0
    %229 = vmatprep.subr.mxu0 0.0
    %230 = vmatpush1.msra.mxu0 0.0
    %231 = vmatprep.subr.mxu0 0.0
    %232 = vmatpush1.msra.mxu0 0.0
    %233 = vmatprep.mubr.f32.mxu0 0.0
    %234 = vmatmul.mubr.f32.gmra.mrb[0].mxu0 %v167
    %v235 = vpop.f32.mrb[0].mxu0
    %v236 = vadd.f32 %v164, %v235
    %v237 = vpop.f32.mrb[0].mxu0
    %238 = vdwg.mxu0
    %239 = vst.msk [vmem:[#allocation8] sm:$0xff] %vm72, %v236
    // Predicated region
    $region34: #{tpu_custom_call.1} parent=1 // pred_check
      _
    $region35: #{tpu_custom_call.1} parent=1 // pred_check_branch
      %241 = sbr.rel (0) target = $region37
    $region36: #{tpu_custom_call.1} parent=1 // pred_region
      %s243 = ssub.s32 128, 128
      %244 = vsyncadd [#allocation4], %s243
      %s246 = sshll.u32 [#allocation8], 4
      %s247 = int_to_ptr.vmem [resolvable:$true] %s246
      %249 = dma.vmem_to_hbm [thread:$0]  %s247, 128, %s5, [#allocation4]
    $region37: #{tpu_custom_call.1} parent=1 // pred_fallthru
      _
    // Predicated region
    $region38: #{tpu_custom_call.1} parent=1 // pred_check
      _
    $region39: #{tpu_custom_call.1} parent=1 // pred_check_branch
      %251 = sbr.rel (0) target = $region41
    $region40: #{tpu_custom_call.1} parent=1 // pred_region
      %252 = dma.done [#allocation4], 128
    $region41: #{tpu_custom_call.1} parent=1 // pred_fallthru
      _
    %253 = vsyncpa [#allocation3], 1
    %254 = vsyncpa [#allocation6], 1
    %255 = vsyncpa [#allocation4], 1

</llo_original>
